<compile_context>
chip_gen: v6e
topology: v6e:2x2x1
jax: 0.10.0
libtpu: 0.0.40
codegen_flags: <defaults>
</compile_context>

<pallas_src>
import functools

import jax
import jax.numpy as jnp
from jax.experimental import pallas as pl
from jax.experimental.pallas import tpu as pltpu


def layer_norm_channel_kernel(x_ref, w_ref, b_ref, o_ref, *, eps):
    # x_ref block: (B_tile, H, C_tile); w_ref / b_ref blocks: (1, C_tile)
    x = x_ref[...].astype(jnp.float32)

    u = jnp.mean(x, axis=1, keepdims=True)          # sublane reduce (XLU)
    d = x - u
    s = jnp.mean(d * d, axis=1, keepdims=True)      # biased variance
    y = d * jax.lax.rsqrt(s + eps)                  # rsqrt -> EUP slot

    w = w_ref[...]                                  # (1, C_tile) -> bcast over (B,H)
    b = b_ref[...]
    o_ref[...] = (w * y + b).astype(o_ref.dtype)


def layer_norm_channel(x, weight, bias, eps=1e-5):
    """x: (B, H, C) float32; weight, bias: (C,).  Normalizes over dim 1 (H),
    applies per-channel affine along the last axis C (matches the PyTorch
    module exactly)."""
    B, H, C = x.shape
    assert weight.shape == (C,) and bias.shape == (C,)

    # ---- tiling -----------------------------------------------------------
    # Channel (lane) tile: a multiple of 128 when C allows, otherwise the full
    # C (Pallas requires the last two block dims to be (8,128)-divisible or
    # equal to the full array dims).
    c_tile = 128 if (C % 128 == 0 and C > 128) else C

    # Fold as many batch rows as fit a modest VMEM budget into one block to
    # amortize per-grid-step overhead (tiny blocks cap HBM throughput).
    bytes_per_batch_row = H * c_tile * x.dtype.itemsize
    b_tile = max(1, min(B, (4 << 20) // max(1, bytes_per_batch_row)))
    while B % b_tile:
        b_tile -= 1

    # Keep >= 2 parallel grid points when possible so v7x's 2 TensorCores are
    # both used (no-op on v5e/v6e, which have a single TC).
    if (B // b_tile) * (C // c_tile) == 1 and B > 1 and B % 2 == 0:
        b_tile = B // 2

    grid = (B // b_tile, C // c_tile)

    x_spec = pl.BlockSpec((b_tile, H, c_tile), lambda i, j: (i, 0, j))
    wb_spec = pl.BlockSpec((1, c_tile), lambda i, j: (0, j))

    kernel = functools.partial(layer_norm_channel_kernel, eps=eps)

    return pl.pallas_call(
        kernel,
        out_shape=jax.ShapeDtypeStruct((B, H, C), x.dtype),
        grid=grid,
        in_specs=[x_spec, wb_spec, wb_spec],
        out_specs=x_spec,
        compiler_params=pltpu.CompilerParams(
            dimension_semantics=("parallel", "parallel")),
    )(x, weight.reshape(1, C), bias.reshape(1, C))


def reference(x, weight, bias, eps=1e-5):
    """Pure-JAX transcription of the PyTorch forward pass."""
    u = jnp.mean(x, axis=1, keepdims=True)
    s = jnp.mean((x - u) ** 2, axis=1, keepdims=True)
    y = (x - u) / jnp.sqrt(s + eps)
    return weight[None, None, :] * y + bias[None, None, :]


if __name__ == "__main__":
    B, H, C = 2, 16, 32   # input shape [B, h, C] per the module docstring

    key = jax.random.PRNGKey(0)
    kx, kw, kb = jax.random.split(key, 3)
    x = jax.random.normal(kx, (B, H, C), jnp.float32)
    weight = 1.0 + 0.1 * jax.random.normal(kw, (C,), jnp.float32)
    bias = 0.1 * jax.random.normal(kb, (C,), jnp.float32)

    out = layer_norm_channel(x, weight, bias)
    out = jax.block_until_ready(out)

    ref = reference(x, weight, bias)
    assert out.shape == (B, H, C)
    assert jnp.allclose(out, ref, rtol=1e-4, atol=1e-4), "mismatch vs reference"

    print("KERNEL_OK")
</pallas_src>

<mosaic_0001>
module attributes {stable_mosaic.version = 11 : i64} {
  func.func @layer_norm_channel_kernel(%arg0: i32, %arg1: i32, %arg2: memref<1x16x32xf32, #tpu.memory_space<vmem>>, %arg3: memref<1x32xf32, #tpu.memory_space<vmem>>, %arg4: memref<1x32xf32, #tpu.memory_space<vmem>>, %arg5: memref<1x16x32xf32, #tpu.memory_space<vmem>>) attributes {dimension_semantics = [#tpu.dimension_semantics<parallel>, #tpu.dimension_semantics<parallel>], iteration_bounds = array<i64: 2, 1>, scalar_prefetch = 0 : i64, scratch_operands = 0 : i64, tpu.core_type = #tpu.core_type<tc>, window_params = [{transform_indices = @transform_0, window_bounds = array<i64: 1, 16, 32>}, {transform_indices = @transform_1, window_bounds = array<i64: 1, 32>}, {transform_indices = @transform_2, window_bounds = array<i64: 1, 32>}, {transform_indices = @transform_3, window_bounds = array<i64: 1, 16, 32>}]} {
    %c0 = arith.constant 0 : index
    %c0_0 = arith.constant 0 : index
    %c0_1 = arith.constant 0 : index
    %0 = vector.load %arg2[%c0, %c0_0, %c0_1] : memref<1x16x32xf32, #tpu.memory_space<vmem>>, vector<1x16x32xf32>
    %cst = arith.constant dense<0.000000e+00> : vector<1x32xf32>
    %1 = vector.multi_reduction <add>, %0, %cst [1] : vector<1x16x32xf32> to vector<1x32xf32>
    %2 = vector.shape_cast %1 : vector<1x32xf32> to vector<1x1x32xf32>
    %cst_2 = arith.constant 1.600000e+01 : f32
    %3 = vector.broadcast %cst_2 : f32 to vector<1x1x32xf32>
    %4 = arith.divf %2, %3 : vector<1x1x32xf32>
    %5 = vector.broadcast %4 : vector<1x1x32xf32> to vector<1x16x32xf32>
    %6 = arith.subf %0, %5 : vector<1x16x32xf32>
    %7 = arith.mulf %6, %6 : vector<1x16x32xf32>
    %cst_3 = arith.constant dense<0.000000e+00> : vector<1x32xf32>
    %8 = vector.multi_reduction <add>, %7, %cst_3 [1] : vector<1x16x32xf32> to vector<1x32xf32>
    %9 = vector.shape_cast %8 : vector<1x32xf32> to vector<1x1x32xf32>
    %cst_4 = arith.constant 1.600000e+01 : f32
    %10 = vector.broadcast %cst_4 : f32 to vector<1x1x32xf32>
    %11 = arith.divf %9, %10 : vector<1x1x32xf32>
    %cst_5 = arith.constant 9.99999974E-6 : f32
    %12 = vector.broadcast %cst_5 : f32 to vector<1x1x32xf32>
    %13 = arith.addf %11, %12 : vector<1x1x32xf32>
    %14 = math.rsqrt %13 : vector<1x1x32xf32>
    %15 = vector.broadcast %14 : vector<1x1x32xf32> to vector<1x16x32xf32>
    %16 = arith.mulf %6, %15 : vector<1x16x32xf32>
    %c0_6 = arith.constant 0 : index
    %c0_7 = arith.constant 0 : index
    %17 = vector.load %arg3[%c0_6, %c0_7] : memref<1x32xf32, #tpu.memory_space<vmem>>, vector<1x32xf32>
    %c0_8 = arith.constant 0 : index
    %c0_9 = arith.constant 0 : index
    %18 = vector.load %arg4[%c0_8, %c0_9] : memref<1x32xf32, #tpu.memory_space<vmem>>, vector<1x32xf32>
    %19 = vector.shape_cast %17 : vector<1x32xf32> to vector<1x1x32xf32>
    %20 = vector.broadcast %19 : vector<1x1x32xf32> to vector<1x16x32xf32>
    %21 = arith.mulf %20, %16 : vector<1x16x32xf32>
    %22 = vector.shape_cast %18 : vector<1x32xf32> to vector<1x1x32xf32>
    %23 = vector.broadcast %22 : vector<1x1x32xf32> to vector<1x16x32xf32>
    %24 = arith.addf %21, %23 : vector<1x16x32xf32>
    %c0_10 = arith.constant 0 : index
    %c0_11 = arith.constant 0 : index
    %c0_12 = arith.constant 0 : index
    %25 = vector.load %arg5[%c0_10, %c0_11, %c0_12] : memref<1x16x32xf32, #tpu.memory_space<vmem>>, vector<1x16x32xf32>
    tpu.vector_store %arg5[%c0_10, %c0_11, %c0_12], %24 {strides = array<i32>} : memref<1x16x32xf32, #tpu.memory_space<vmem>>, vector<1x16x32xf32>,
    return
  }
  func.func @transform_0(%arg0: i32, %arg1: i32) -> (i32, i32, i32) {
    %c0_i32 = arith.constant 0 : i32
    %c0_i32_0 = arith.constant 0 : i32
    return %arg0, %c0_i32, %arg1 : i32, i32, i32
  }
  func.func @transform_1(%arg0: i32, %arg1: i32) -> (i32, i32) {
    %c0_i32 = arith.constant 0 : i32
    %c0_i32_0 = arith.constant 0 : i32
    return %c0_i32, %arg1 : i32, i32
  }
  func.func @transform_2(%arg0: i32, %arg1: i32) -> (i32, i32) {
    %c0_i32 = arith.constant 0 : i32
    %c0_i32_0 = arith.constant 0 : i32
    return %c0_i32, %arg1 : i32, i32
  }
  func.func @transform_3(%arg0: i32, %arg1: i32) -> (i32, i32, i32) {
    %c0_i32 = arith.constant 0 : i32
    %c0_i32_0 = arith.constant 0 : i32
    return %arg0, %c0_i32, %arg1 : i32, i32, i32
  }
}

</mosaic_0001>

<llo_original>
// kernel: tpu_custom_call.1
$region0: #{tpu_custom_call.1}
  #allocation0 [shape = 'u32[]', space=smem, size = 0x4, offset = 0x4, fixed_abs, tag = 'smem constant byte address 0x4 - core index']
  #allocation1 [shape = 'u32[144,128]{1,0:T(1,128)}', space=vmem, size = 0x12000, scoped, tag = 'internal scratch']
  %s0 = inlined_call_operand.hbm [shape: f32[2,16,32], index: 0, kind: input, shape index: {}]
  %s1 = inlined_call_operand.vmem [shape: f32[1,32], index: 1, kind: input, shape index: {}]
  %s2 = inlined_call_operand.vmem [shape: f32[1,32], index: 2, kind: input, shape index: {}]
  %s3 = inlined_call_operand.hbm [shape: f32[2,16,32], index: 3, kind: output, shape index: {}]
  %s4 = sld [smem:[#allocation0]]
  $region49: #{tpu_custom_call.1} parent=0
    _
  %s6 = ssub.s32 1, %s4
  %s7 = scalar_select 0, %s6, %s4
  $region1: #{tpu_custom_call.1} parent=0
    #allocation2 [shape = 'u8[16384]{0}', space=vmem, size = 0x4000, scoped, tag = 'input window, operand 0']
    #allocation3 [shape = 's32[2]{0}', space=sflag, size = 0x8, scoped, tag = 'scoped memory for tpu_custom_call.1']
    #allocation4 [shape = 's32[2]{0}', space=sflag, size = 0x8, scoped, tag = 'scoped memory for tpu_custom_call.1']
    #allocation5 [shape = 'u8[16384]{0}', space=vmem, size = 0x4000, scoped, tag = 'output window, operand 0']
    %8 = vsyncpa [#allocation3], 0
    %s9 = scalar_lea.sflag [#allocation3], 1
    %10 = vsyncpa %s9, 0
    %11 = vsyncpa [#allocation4], 0
    %s12 = scalar_lea.sflag [#allocation4], 1
    %13 = vsyncpa %s12, 0
    loop: start=0, step=1, limit=4
    $region2: #{tpu_custom_call.1} parent=1 // loop_pre_header
      _
    $region3: #{tpu_custom_call.1} parent=1 // loop_header
      %s15 = sphi 0, %s19
      %p16 = scmp.ge.s32.totalorder %s15, 4
      %s22 = sphi 0, %s34
      %s23 = sphi 0, %s30
      %s24 = sphi 0, %s22
      %s25 = sphi 0, %s23
      %s26 = sphi 0, %s24
      %s27 = sphi 0, %s25
      %s39 = sphi 0, %s41
      %s42 = sphi 0, %s39
      %s43 = sphi 0, %s42
      %s59 = sphi 0, %s43
      %s65 = sphi 0, %s67
      %s68 = sphi 0, %s65
      %s69 = sphi 0, %s68
      %s85 = sphi 0, %s69
      %s91 = sphi 0, %s93
      %s94 = sphi 0, %s91
      %s95 = sphi 0, %s94
      %s111 = sphi 0, %s95
      %s119 = sphi 0, %s121
      %s122 = sphi 0, %s119
      %s123 = sphi 0, %s122
      %s139 = sphi 0, %s123
    $region4: #{tpu_custom_call.1} parent=1 // loop_header_branch
      %18 = sbr.rel (%p16) target = $region8
    $region5: #{tpu_custom_call.1} parent=1 // loop_body
      %s20 = ssub.s32 %s15, 1
      %s21 = ssub.s32 %s15, 2
      %s28 = sadd.s32 1, %s23
      %p29 = scmp.ge.s32.totalorder %s28, 1
      %s30 = scalar_select %p29, 0, %s28
      %s31 = sadd.s32 1, %s22
      %s32 = scalar_select %p29, %s31, %s22
      %p33 = scmp.ge.s32.totalorder %s32, 2
      %s34 = scalar_select %p33, 0, %s32
      %s35 = ssub.s32 %s22, %s34
      %s36 = ssub.s32 %s23, %s30
      %s37 = sor.u32 %s35, %s36
      %p38 = scmp.eq.s32.totalorder %s37, 0
      %s40 = sadd.s32 %s39, 1
      %s41 = scalar_select %p38, %s39, %s40
      %p44 = pneg %p38
      %p45 = scmp.eq.s32.totalorder %s15, 1
      %p46 = por %p44, %p45
      %p47 = scmp.ne.s32.totalorder %s39, %s42
      %p48 = scmp.eq.s32.totalorder %s15, 0
      %p49 = por %p47, %p48
      %p50 = scmp.ne.s32.totalorder %s39, %s42
      %p51 = scmp.eq.s32.totalorder %s20, 1
      %p52 = por %p50, %p51
      %p53 = scmp.ne.s32.totalorder %s42, %s43
      %p54 = scmp.eq.s32.totalorder %s20, 0
      %p55 = por %p53, %p54
      %p56 = scmp.ne.s32.totalorder %s42, %s43
      %p57 = scmp.eq.s32.totalorder %s21, 1
      %p58 = por %p56, %p57
      %p60 = scmp.ne.s32.totalorder %s43, %s59
      %p61 = scmp.eq.s32.totalorder %s21, 0
      %p62 = por %p60, %p61
      %s63 = ssub.s32 %s23, %s30
      %p64 = scmp.eq.s32.totalorder %s63, 0
      %s66 = sadd.s32 %s65, 1
      %s67 = scalar_select %p64, %s65, %s66
      %p70 = pneg %p64
      %p71 = scmp.eq.s32.totalorder %s15, 1
      %p72 = por %p70, %p71
      %p73 = scmp.ne.s32.totalorder %s65, %s68
      %p74 = scmp.eq.s32.totalorder %s15, 0
      %p75 = por %p73, %p74
      %p76 = scmp.ne.s32.totalorder %s65, %s68
      %p77 = scmp.eq.s32.totalorder %s20, 1
      %p78 = por %p76, %p77
      %p79 = scmp.ne.s32.totalorder %s68, %s69
      %p80 = scmp.eq.s32.totalorder %s20, 0
      %p81 = por %p79, %p80
      %p82 = scmp.ne.s32.totalorder %s68, %s69
      %p83 = scmp.eq.s32.totalorder %s21, 1
      %p84 = por %p82, %p83
      %p86 = scmp.ne.s32.totalorder %s69, %s85
      %p87 = scmp.eq.s32.totalorder %s21, 0
      %p88 = por %p86, %p87
      %s89 = ssub.s32 %s23, %s30
      %p90 = scmp.eq.s32.totalorder %s89, 0
      %s92 = sadd.s32 %s91, 1
      %s93 = scalar_select %p90, %s91, %s92
      %p96 = pneg %p90
      %p97 = scmp.eq.s32.totalorder %s15, 1
      %p98 = por %p96, %p97
      %p99 = scmp.ne.s32.totalorder %s91, %s94
      %p100 = scmp.eq.s32.totalorder %s15, 0
      %p101 = por %p99, %p100
      %p102 = scmp.ne.s32.totalorder %s91, %s94
      %p103 = scmp.eq.s32.totalorder %s20, 1
      %p104 = por %p102, %p103
      %p105 = scmp.ne.s32.totalorder %s94, %s95
      %p106 = scmp.eq.s32.totalorder %s20, 0
      %p107 = por %p105, %p106
      %p108 = scmp.ne.s32.totalorder %s94, %s95
      %p109 = scmp.eq.s32.totalorder %s21, 1
      %p110 = por %p108, %p109
      %p112 = scmp.ne.s32.totalorder %s95, %s111
      %p113 = scmp.eq.s32.totalorder %s21, 0
      %p114 = por %p112, %p113
      %s115 = ssub.s32 %s22, %s34
      %s116 = ssub.s32 %s23, %s30
      %s117 = sor.u32 %s115, %s116
      %p118 = scmp.eq.s32.totalorder %s117, 0
      %s120 = sadd.s32 %s119, 1
      %s121 = scalar_select %p118, %s119, %s120
      %p124 = pneg %p118
      %p125 = scmp.eq.s32.totalorder %s15, 1
      %p126 = por %p124, %p125
      %p127 = scmp.ne.s32.totalorder %s119, %s122
      %p128 = scmp.eq.s32.totalorder %s15, 0
      %p129 = por %p127, %p128
      %p130 = scmp.ne.s32.totalorder %s119, %s122
      %p131 = scmp.eq.s32.totalorder %s20, 1
      %p132 = por %p130, %p131
      %p133 = scmp.ne.s32.totalorder %s122, %s123
      %p134 = scmp.eq.s32.totalorder %s20, 0
      %p135 = por %p133, %p134
      %p136 = scmp.ne.s32.totalorder %s122, %s123
      %p137 = scmp.eq.s32.totalorder %s21, 1
      %p138 = por %p136, %p137
      %p140 = scmp.ne.s32.totalorder %s123, %s139
      %p141 = scmp.eq.s32.totalorder %s21, 0
      %p142 = por %p140, %p141
      %p143 = scmp.le.s32.totalorder 1, %s15
      %p144 = scmp.lt.s32.totalorder %s15, 3
      %p145 = pnand %p143, %p144
      %p146 = pneg %p145
      // Predicated region
      $region9: #{tpu_custom_call.1} parent=5 // pred_check
        _
      $region10: #{tpu_custom_call.1} parent=5 // pred_check_branch
        %148 = sbr.rel (%p145) target = $region12
      $region11: #{tpu_custom_call.1} parent=5 // pred_region
        %s149 = ssub.s32 %s15, 1
        // Predicated region
        $region13: #{tpu_custom_call.1} parent=11 // pred_check
          %p150 = pneg %p81
        $region14: #{tpu_custom_call.1} parent=11 // pred_check_branch
          %152 = sbr.rel (%p150) target = $region16
        $region15: #{tpu_custom_call.1} parent=11 // pred_region
          %p153 = scmp.lt.s32.totalorder %s25, 0
          %s154 = scalar_select %p153, %s25, 0
          %s155 = scalar_lea.vmem %s1, %s154
        $region16: #{tpu_custom_call.1} parent=11 // pred_fallthru
          _
        // Predicated region
        $region17: #{tpu_custom_call.1} parent=11 // pred_check
          %p156 = pneg %p107
        $region18: #{tpu_custom_call.1} parent=11 // pred_check_branch
          %158 = sbr.rel (%p156) target = $region20
        $region19: #{tpu_custom_call.1} parent=11 // pred_region
          %p159 = scmp.lt.s32.totalorder %s25, 0
          %s160 = scalar_select %p159, %s25, 0
          %s161 = scalar_lea.vmem %s2, %s160
        $region20: #{tpu_custom_call.1} parent=11 // pred_fallthru
          _
      $region12: #{tpu_custom_call.1} parent=5 // pred_fallthru
        _
      %p162 = scmp.lt.s32.totalorder %s15, 2
      // Predicated region
      $region21: #{tpu_custom_call.1} parent=5 // pred_check
        %p163 = pneg %p162
      $region22: #{tpu_custom_call.1} parent=5 // pred_check_branch
        %165 = sbr.rel (%p163) target = $region24
      $region23: #{tpu_custom_call.1} parent=5 // pred_region
        // Predicated region
        $region25: #{tpu_custom_call.1} parent=23 // pred_check
          %p166 = pneg %p49
        $region26: #{tpu_custom_call.1} parent=23 // pred_check_branch
          %168 = sbr.rel (%p166) target = $region28
        $region27: #{tpu_custom_call.1} parent=23 // pred_region
          %s169 = sand.u32 %s39, 1
          %s170 = scalar_lea.sflag [#allocation3], %s169
          %s171 = sand.u32 %s39, 1
          %s172 = smul.addr %s171, 16
          %s173 = scalar_lea.vmem [#allocation2], %s172
          %s175 = ssub.s32 256, 256
          %176 = vsyncadd %s170, %s175
          %s177 = smul.addr %s22, 2
          %s178 = sadd.s32 %s23, %s177
          %s179 = smul.addr %s178, 128
          %s180 = scalar_lea.hbm %s0, %s179
          %s181 = sshll.u32 %s173, 4
          %s182 = int_to_ptr.vmem [resolvable:$true] %s181
          %187 = dma.hbm_to_vmem [thread:$0]  %s180, 256, %s182, %s170, 128, 128, 8
        $region28: #{tpu_custom_call.1} parent=23 // pred_fallthru
          _
      $region24: #{tpu_custom_call.1} parent=5 // pred_fallthru
        _
      %p188 = scmp.le.s32.totalorder 1, %s15
      %p189 = scmp.lt.s32.totalorder %s15, 3
      %p190 = pnand %p188, %p189
      %p191 = pneg %p190
      // Predicated region
      $region29: #{tpu_custom_call.1} parent=5 // pred_check
        _
      $region30: #{tpu_custom_call.1} parent=5 // pred_check_branch
        %193 = sbr.rel (%p190) target = $region32
      $region31: #{tpu_custom_call.1} parent=5 // pred_region
        %s194 = ssub.s32 %s15, 1
        %s195 = sand.u32 %s42, 1
        %s196 = scalar_lea.sflag [#allocation3], %s195
        %s197 = sand.u32 %s42, 1
        %s198 = smul.addr %s197, 16
        %s199 = scalar_lea.vmem [#allocation2], %s198
        // Predicated region
        $region33: #{tpu_custom_call.1} parent=31 // pred_check
          %p200 = pneg %p55
        $region34: #{tpu_custom_call.1} parent=31 // pred_check_branch
          %202 = sbr.rel (%p200) target = $region36
        $region35: #{tpu_custom_call.1} parent=31 // pred_region
          %203 = dma.done %s196, 256
        $region36: #{tpu_custom_call.1} parent=31 // pred_fallthru
          _
        %s204 = sand.u32 %s42, 1
        %s205 = scalar_lea.sflag [#allocation3], %s204
        %s206 = sand.u32 %s42, 1
        %s207 = smul.addr %s206, 16
        %s208 = scalar_lea.vmem [#allocation2], %s207
        %p209 = pneg %p55
        %p210 = pneg %p52
        %p211 = scmp.lt.s32.totalorder %s25, 0
        %s212 = scalar_select %p211, %s25, 0
        %s213 = scalar_lea.vmem %s1, %s212
        %p214 = pneg %p81
        %p215 = pneg %p78
        %p216 = scmp.lt.s32.totalorder %s25, 0
        %s217 = scalar_select %p216, %s25, 0
        %s218 = scalar_lea.vmem %s2, %s217
        %p219 = pneg %p107
        %p220 = pneg %p104
        %p221 = pneg %p135
        %p222 = pneg %p132
        %s223 = sand.u32 %s122, 1
        %s224 = scalar_lea.sflag [#allocation4], %s223
        %s225 = sand.u32 %s122, 1
        %s226 = smul.addr %s225, 16
        %s227 = scalar_lea.vmem [#allocation5], %s226
        %p228 = scmp.lt.s32.totalorder %s25, 0
        %s229 = scalar_select %p228, %s25, 0
        %s230 = scalar_lea.vmem %s1, %s229
        %p231 = scmp.lt.s32.totalorder %s25, 0
        %s232 = scalar_select %p231, %s25, 0
        %s233 = scalar_lea.vmem %s2, %s232
        %v234 = vld [vmem:[%s199] sm:$0xff]
        %v235 = vld [vmem:[%s199 + $0x8] sm:$0xff]
        %vm236 = vcmask 261120
        %v237 = vsel %vm236, %v234, 0.0
        %v238 = vsel %vm236, %v235, 0.0
        %v239 = vadd.f32 %v237, %v238
        %v240 = vrot.slane %v239, 4
        %v241 = vadd.f32 %v239, %v240
        %v242 = vrot.slane %v241, 2
        %v243 = vadd.f32 %v241, %v242
        %v244 = vrot.slane %v243, 1
        %v245 = vadd.f32 %v243, %v244
        %v246 = vrcp.pop 16.0
        %v247 = vmul.f32 %v245, %v246
        %v248 = vsub.f32 %v234, %v247
        %v249 = vsub.f32 %v235, %v247
        %v250 = vmul.f32 %v248, %v248
        %v251 = vmul.f32 %v249, %v249
        %v252 = vsel %vm236, %v250, 0.0
        %v253 = vsel %vm236, %v251, 0.0
        %v254 = vadd.f32 %v252, %v253
        %v255 = vrot.slane %v254, 4
        %v256 = vadd.f32 %v254, %v255
        %v257 = vrot.slane %v256, 2
        %v258 = vadd.f32 %v256, %v257
        %v259 = vrot.slane %v258, 1
        %v260 = vadd.f32 %v258, %v259
        %v261 = vmul.f32 %v260, %v246
        %v262 = vadd.f32 %v261, 1e-05
        %v263 = vrsqrt.pop %v262
        %v264 = vmul.f32 %v248, %v263
        %v265 = vmul.f32 %v249, %v263
        %v266 = vld [vmem:[%s230] sm:$0x1]
        %v267 = vld [vmem:[%s233] sm:$0x1]
        %v269 = vlaneseq
        %v270 = vshrl.u32 %v269, 7
        %v271 = vsub.s32 0, %v270
        %v272 = vrot.slane %v266, %v271
        %v274 = vmul.f32 %v272, %v264
        %v275 = vmul.f32 %v272, %v265
        %v277 = vlaneseq
        %v278 = vshrl.u32 %v277, 7
        %v279 = vsub.s32 0, %v278
        %v280 = vrot.slane %v267, %v279
        %v282 = vadd.f32 %v274, %v280
        %v283 = vadd.f32 %v275, %v280
        %284 = vst.msk [vmem:[%s227] sm:$0xff] %vm236, %v282
        %285 = vst.msk [vmem:[%s227 + $0x8] sm:$0xff] %vm236, %v283
        %s286 = sand.u32 %s122, 1
        %s287 = scalar_lea.sflag [#allocation4], %s286
        %s288 = sand.u32 %s122, 1
        %s289 = smul.addr %s288, 16
        %s290 = scalar_lea.vmem [#allocation5], %s289
        // Predicated region
        $region37: #{tpu_custom_call.1} parent=31 // pred_check
          %p291 = pneg %p132
        $region38: #{tpu_custom_call.1} parent=31 // pred_check_branch
          %293 = sbr.rel (%p291) target = $region40
        $region39: #{tpu_custom_call.1} parent=31 // pred_region
          %s295 = ssub.s32 256, 256
          %296 = vsyncadd %s287, %s295
          %s297 = smul.addr %s24, 2
          %s298 = sadd.s32 %s25, %s297
          %s299 = smul.addr %s298, 128
          %s300 = scalar_lea.hbm %s3, %s299
          %s301 = sshll.u32 %s290, 4
          %s302 = int_to_ptr.vmem [resolvable:$true] %s301
          %307 = dma.vmem_to_hbm [thread:$0]  %s302, 256, %s300, %s287, 128, 128, 8
        $region40: #{tpu_custom_call.1} parent=31 // pred_fallthru
          _
      $region32: #{tpu_custom_call.1} parent=5 // pred_fallthru
        _
      %p308 = scmp.le.s32.totalorder 2, %s15
      // Predicated region
      $region41: #{tpu_custom_call.1} parent=5 // pred_check
        %p309 = pneg %p308
      $region42: #{tpu_custom_call.1} parent=5 // pred_check_branch
        %311 = sbr.rel (%p309) target = $region44
      $region43: #{tpu_custom_call.1} parent=5 // pred_region
        %s312 = ssub.s32 %s15, 2
        // Predicated region
        $region45: #{tpu_custom_call.1} parent=43 // pred_check
          %p313 = pneg %p138
        $region46: #{tpu_custom_call.1} parent=43 // pred_check_branch
          %315 = sbr.rel (%p313) target = $region48
        $region47: #{tpu_custom_call.1} parent=43 // pred_region
          %s316 = sand.u32 %s123, 1
          %s317 = scalar_lea.sflag [#allocation4], %s316
          %s318 = sand.u32 %s123, 1
          %s319 = smul.addr %s318, 16
          %s320 = scalar_lea.vmem [#allocation5], %s319
          %321 = dma.done %s317, 256
        $region48: #{tpu_custom_call.1} parent=43 // pred_fallthru
          _
      $region44: #{tpu_custom_call.1} parent=5 // pred_fallthru
        _
    $region6: #{tpu_custom_call.1} parent=1 // loop_footer
      %s19 = sadd.s32 1, %s15
    $region7: #{tpu_custom_call.1} parent=1 // loop_footer_branch
      %14 = sbr.rel target = $region3
    $region8: #{tpu_custom_call.1} parent=1 // loop_exit
      _
    %322 = vsyncpa [#allocation3], 1
    %s323 = scalar_lea.sflag [#allocation3], 1
    %324 = vsyncpa %s323, 1
    %325 = vsyncpa [#allocation4], 1
    %s326 = scalar_lea.sflag [#allocation4], 1
    %327 = vsyncpa %s326, 1

</llo_original>
